<compile_context>
chip_gen: v5e
topology: v5e:2x2
jax: 0.10.0
libtpu: 0.0.40
codegen_flags: <defaults>
</compile_context>

<pallas_src>
import functools

import jax
import jax.numpy as jnp
from jax.experimental import pallas as pl
from jax.experimental.pallas import tpu as pltpu


def _round_up(x, m):
    return (x + m - 1) // m * m


def _tile_bytes(rows, cols, itemsize):
    # VMEM footprint of one (rows, cols) tile, including (8, 128) layout padding.
    return _round_up(max(rows, 1), 8) * _round_up(max(cols, 1), 128) * itemsize


def _fused_kernel(x_ref, w_ref, b_ref, o_ref):
    # out = patches @ (Wc @ Wp) + (bc @ Wp + bp): single MXU matmul, f32 acc.
    acc = jnp.dot(x_ref[...], w_ref[...], preferred_element_type=jnp.float32)
    o_ref[...] = (acc + b_ref[...]).astype(o_ref.dtype)


def _two_stage_kernel(x_ref, wc_ref, bc_ref, wp_ref, bp_ref, o_ref):
    # feat = patches @ Wc + bc ; out = feat @ Wp + bp (both on-chip, f32 acc).
    feat = jnp.dot(x_ref[...], wc_ref[...], preferred_element_type=jnp.float32)
    feat = (feat + bc_ref[...]).astype(jnp.bfloat16)
    acc = jnp.dot(feat, wp_ref[...], preferred_element_type=jnp.float32)
    o_ref[...] = (acc + bp_ref[...]).astype(o_ref.dtype)


def _vmem_capacity_bytes():
    # Generation-aware budget: 128 MiB (v5e/v6e) vs 64 MiB per-TC (v7x).
    try:
        return int(getattr(pltpu.get_tpu_info(), "vmem_capacity_bytes", 64 << 20))
    except Exception:
        return 64 << 20


def hybrid_embed(x_nchw, conv_w, conv_b, proj_w, proj_b, patch, *, out_dtype=None):
    """x_nchw: (B,C,H,W); conv_w: (F,C,p,p); conv_b: (F,); proj_w: (E,F); proj_b: (E,)."""
    B, C, H, W = x_nchw.shape
    Hf, Wf = H // patch, W // patch
    F = conv_w.shape[0]
    E = proj_w.shape[0]
    M = B * Hf * Wf
    K = C * patch * patch
    out_dtype = x_nchw.dtype if out_dtype is None else out_dtype
    out_isize = jnp.dtype(out_dtype).itemsize

    # ---- im2col (wrapper side): ONE bf16 pass, no padding, no extra copies ---
    # stride == kernel, so this is a pure reshape/transpose; casting to bf16
    # *before* the transpose halves its HBM traffic.
    # TODO(synk): fuse this gather into the kernel (grid over (B, Hf) with
    # pl.Squeezed BlockSpec dims + in-kernel relayout) to remove the remaining
    # HBM round-trip of the (M, K) patch matrix.
    patches = (x_nchw.astype(jnp.bfloat16)
               .reshape(B, C, Hf, patch, Wf, patch)
               .transpose(0, 2, 4, 1, 3, 5)
               .reshape(M, K))

    # ---- weights: fuse conv-stem + proj only when it reduces MXU flops -------
    wc = conv_w.reshape(F, K).T.astype(jnp.float32)   # (K, F), rows ordered (c, pi, pj)
    wp = proj_w.T.astype(jnp.float32)                 # (F, E)
    fuse = K * E <= F * (K + E)                       # fused flops <= two-stage flops

    # ---- generation-aware tile / VMEM budget ---------------------------------
    vmem_cap = _vmem_capacity_bytes()
    if vmem_cap >= (96 << 20):          # v5e / v6e: 128 MiB physical VMEM
        budget, limit_cap, tm_max = 80 << 20, 100 << 20, 1024
    else:                               # v7x: 64 MiB per TensorCore
        budget, limit_cap, tm_max = 28 << 20, 44 << 20, 512

    # Tile E (multiples of 128) only in the fused path so the resident weight
    # never collapses TM; in the two-stage path the first matmul would be
    # recomputed per E block, so keep a single E block there.
    TE = E
    if fuse and E % 128 == 0:
        while TE % 256 == 0 and 2 * _tile_bytes(K, TE, 2) > budget // 3:
            TE //= 2

    def _footprint(tm, te):
        if fuse:
            return (2 * _tile_bytes(tm, K, 2)          # patch tile (bf16, dbl buf)
                    + 2 * _tile_bytes(K, te, 2)        # fused weight (bf16, dbl buf)
                    + 2 * _tile_bytes(1, te, 4)        # fused bias (f32)
                    + 2 * _tile_bytes(tm, te, out_isize))
        return (2 * _tile_bytes(tm, K, 2)
                + 2 * _tile_bytes(K, F, 2) + 2 * _tile_bytes(1, F, 4)
                + 2 * _tile_bytes(F, E, 2) + 2 * _tile_bytes(1, E, 4)
                + _tile_bytes(tm, F, 4)                # on-chip intermediate
                + 2 * _tile_bytes(tm, E, out_isize))

    TM = min(tm_max, _round_up(M, 8))
    while TM > 128 and _footprint(TM, TE) > budget:
        TM = _round_up(TM // 2, 8)
    # v7x has 2 TensorCores: ensure the "parallel" M axis has >= 2 tiles so both
    # cores get work (harmless ~0.35us extra grid step on single-TC v5e/v6e).
    if M > 8 and pl.cdiv(M, TM) < 2:
        TM = _round_up(pl.cdiv(M, 2), 8)

    grid = (pl.cdiv(M, TM), pl.cdiv(E, TE))
    vmem_limit = int(min(max(2 * _footprint(TM, TE), 16 << 20), limit_cap))
    compiler_params = pltpu.CompilerParams(
        dimension_semantics=("parallel", "parallel"),
        vmem_limit_bytes=vmem_limit,
    )

    # TODO(synk): single-buffer the VMEM-resident weight/bias via
    # pipeline_mode=pl.Buffered(1) (and sweep pl.Buffered(3) on the patch tile)
    # once validated on this JAX version; frees ~2*K*TE bytes of VMEM on v7x.

    x_spec = pl.BlockSpec((TM, K), lambda i, j: (i, 0))          # streamed over M
    out_spec = pl.BlockSpec((TM, TE), lambda i, j: (i, j))
    out_shape = jax.ShapeDtypeStruct((M, E), out_dtype)

    if fuse:
        # Exact fusion (no nonlinearity between stem and proj).  The composed
        # weight is rounded once to bf16; keep it f32 if tighter numerics are
        # needed (it is VMEM-resident, so the cost is VMEM, not per-step HBM).
        w_fused = (wc @ wp).astype(jnp.bfloat16)                       # (K, E)
        b_fused = (conv_b.astype(jnp.float32) @ wp
                   + proj_b.astype(jnp.float32)).reshape(1, E)         # (1, E)
        out = pl.pallas_call(
            _fused_kernel,
            out_shape=out_shape,
            grid=grid,
            in_specs=[
                x_spec,
                pl.BlockSpec((K, TE), lambda i, j: (0, j)),   # fused weight, resident
                pl.BlockSpec((1, TE), lambda i, j: (0, j)),   # fused bias,   resident
            ],
            out_specs=out_spec,
            compiler_params=compiler_params,
        )(patches, w_fused, b_fused)
    else:
        out = pl.pallas_call(
            _two_stage_kernel,
            out_shape=out_shape,
            grid=grid,
            in_specs=[
                x_spec,
                pl.BlockSpec((K, F), lambda i, j: (0, 0)),    # conv-stem weight
                pl.BlockSpec((1, F), lambda i, j: (0, 0)),    # conv-stem bias
                pl.BlockSpec((F, E), lambda i, j: (0, 0)),    # proj weight
                pl.BlockSpec((1, E), lambda i, j: (0, 0)),    # proj bias
            ],
            out_specs=out_spec,
            compiler_params=compiler_params,
        )(patches,
          wc.astype(jnp.bfloat16), conv_b.astype(jnp.float32).reshape(1, F),
          wp.astype(jnp.bfloat16), proj_b.astype(jnp.float32).reshape(1, E))

    # (M, E) -> (B, num_patches, embed_dim): free reshape, nothing to strip.
    return out.reshape(B, Hf * Wf, E)


def _reference(x_nchw, conv_w, conv_b, proj_w, proj_b, patch):
    # pure-JAX reference: conv stem -> flatten(2).transpose(1,2) -> linear
    feat = jax.lax.conv_general_dilated(
        x_nchw, conv_w, window_strides=(patch, patch), padding="VALID",
        dimension_numbers=("NCHW", "OIHW", "NCHW"),
    ) + conv_b[None, :, None, None]
    B, Cf, Hf, Wf = feat.shape
    tokens = feat.reshape(B, Cf, Hf * Wf).transpose(0, 2, 1)
    return tokens @ proj_w.T + proj_b


if __name__ == "__main__":
    # Small shapes consistent with the module:
    # batch=2, in_chans=4, img=16x16, patch=4 -> feature_size=4x4 (16 patches),
    # feature_dim=32, embed_dim=32.
    B, C, H, W = 2, 4, 16, 16
    patch = 4
    feat_dim, embed_dim = 32, 32

    key = jax.random.PRNGKey(0)
    kx, kcw, kcb, kpw, kpb = jax.random.split(key, 5)
    x = jax.random.normal(kx, (B, C, H, W), dtype=jnp.float32)
    conv_w = jax.random.normal(kcw, (feat_dim, C, patch, patch), dtype=jnp.float32) * 0.05
    conv_b = jax.random.normal(kcb, (feat_dim,), dtype=jnp.float32) * 0.05
    proj_w = jax.random.normal(kpw, (embed_dim, feat_dim), dtype=jnp.float32) * 0.05
    proj_b = jax.random.normal(kpb, (embed_dim,), dtype=jnp.float32) * 0.05

    fn = jax.jit(functools.partial(hybrid_embed, patch=patch))
    out = jax.block_until_ready(fn(x, conv_w, conv_b, proj_w, proj_b))

    ref = _reference(x, conv_w, conv_b, proj_w, proj_b, patch)
    assert out.shape == (B, (H // patch) * (W // patch), embed_dim), out.shape
    # bf16 MXU operands (f32 accumulation) -> tolerance relaxed vs. pure f32.
    err = float(jnp.max(jnp.abs(out - ref)))
    assert jnp.allclose(out, ref, atol=1e-2, rtol=1e-2), err

    print("KERNEL_OK")
</pallas_src>

<mosaic_0001>
module attributes {stable_mosaic.version = 11 : i64} {
  func.func @_fused_kernel(%arg0: i32, %arg1: i32, %arg2: memref<16x64xbf16, #tpu.memory_space<vmem>>, %arg3: memref<64x32xbf16, #tpu.memory_space<vmem>>, %arg4: memref<1x32xf32, #tpu.memory_space<vmem>>, %arg5: memref<16x32xf32, #tpu.memory_space<vmem>>) attributes {dimension_semantics = [#tpu.dimension_semantics<parallel>, #tpu.dimension_semantics<parallel>], iteration_bounds = array<i64: 2, 1>, scalar_prefetch = 0 : i64, scratch_operands = 0 : i64, tpu.core_type = #tpu.core_type<tc>, window_params = [{transform_indices = @transform_0, window_bounds = array<i64: 16, 64>}, {transform_indices = @transform_1, window_bounds = array<i64: 64, 32>}, {transform_indices = @transform_2, window_bounds = array<i64: 1, 32>}, {transform_indices = @transform_3, window_bounds = array<i64: 16, 32>}]} {
    %c0 = arith.constant 0 : index
    %c0_0 = arith.constant 0 : index
    %0 = vector.load %arg2[%c0, %c0_0] : memref<16x64xbf16, #tpu.memory_space<vmem>>, vector<16x64xbf16>
    %c0_1 = arith.constant 0 : index
    %c0_2 = arith.constant 0 : index
    %1 = vector.load %arg3[%c0_1, %c0_2] : memref<64x32xbf16, #tpu.memory_space<vmem>>, vector<64x32xbf16>
    %cst = arith.constant dense<0.000000e+00> : vector<16x32xf32>
    %2 = tpu.matmul %0, %1, %cst {dimension_numbers = #tpu.dot_dimension_numbers<[1], [0], [0], [1], [0, 0, 1, 1], [], []>} : vector<16x64xbf16>, vector<64x32xbf16>, vector<16x32xf32> -> vector<16x32xf32>
    %c0_3 = arith.constant 0 : index
    %c0_4 = arith.constant 0 : index
    %3 = vector.load %arg4[%c0_3, %c0_4] : memref<1x32xf32, #tpu.memory_space<vmem>>, vector<1x32xf32>
    %4 = vector.broadcast %3 : vector<1x32xf32> to vector<16x32xf32>
    %5 = arith.addf %2, %4 : vector<16x32xf32>
    %c0_5 = arith.constant 0 : index
    %c0_6 = arith.constant 0 : index
    %6 = vector.load %arg5[%c0_5, %c0_6] : memref<16x32xf32, #tpu.memory_space<vmem>>, vector<16x32xf32>
    tpu.vector_store %arg5[%c0_5, %c0_6], %5 {strides = array<i32>} : memref<16x32xf32, #tpu.memory_space<vmem>>, vector<16x32xf32>,
    return
  }
  func.func @transform_0(%arg0: i32, %arg1: i32) -> (i32, i32) {
    %c0_i32 = arith.constant 0 : i32
    %c0_i32_0 = arith.constant 0 : i32
    return %arg0, %c0_i32 : i32, i32
  }
  func.func @transform_1(%arg0: i32, %arg1: i32) -> (i32, i32) {
    %c0_i32 = arith.constant 0 : i32
    %c0_i32_0 = arith.constant 0 : i32
    return %c0_i32, %arg1 : i32, i32
  }
  func.func @transform_2(%arg0: i32, %arg1: i32) -> (i32, i32) {
    %c0_i32 = arith.constant 0 : i32
    %c0_i32_0 = arith.constant 0 : i32
    return %c0_i32, %arg1 : i32, i32
  }
  func.func @transform_3(%arg0: i32, %arg1: i32) -> (i32, i32) {
    %c0_i32 = arith.constant 0 : i32
    return %arg0, %arg1 : i32, i32
  }
}

</mosaic_0001>

<llo_original>
// kernel: hybrid_embed.1
$region0: #{hybrid_embed.1}
  #allocation0 [shape = 'u32[]', space=smem, size = 0x4, offset = 0x4, fixed_abs, tag = 'smem constant byte address 0x4 - core index']
  #allocation1 [shape = 'u32[72,128]{1,0:T(1,128)}', space=vmem, size = 0x9000, scoped, tag = 'internal scratch']
  %s0 = inlined_call_operand.vmem [shape: bf16[32,64], index: 0, kind: input, shape index: {}]
  %s1 = inlined_call_operand.vmem [shape: bf16[64,32], index: 1, kind: input, shape index: {}]
  %s2 = inlined_call_operand.vmem [shape: f32[1,32], index: 2, kind: input, shape index: {}]
  %s3 = inlined_call_operand.hbm [shape: f32[32,32], index: 3, kind: output, shape index: {}]
  %s4 = sld [smem:[#allocation0]]
  $region45: #{hybrid_embed.1} parent=0
    _
  %s6 = ssub.s32 1, %s4
  %s7 = scalar_select 0, %s6, %s4
  $region1: #{hybrid_embed.1} parent=0
    #allocation2 [shape = 'u8[16384]{0}', space=vmem, size = 0x4000, scoped, tag = 'output window, operand 0']
    #allocation3 [shape = 's32[2]{0}', space=sflag, size = 0x8, scoped, tag = 'scoped memory for hybrid_embed.1']
    %8 = vsyncpa [#allocation3], 0
    %s9 = scalar_lea.sflag [#allocation3], 1
    %10 = vsyncpa %s9, 0
    loop: start=0, step=1, limit=4
    $region2: #{hybrid_embed.1} parent=1 // loop_pre_header
      _
    $region3: #{hybrid_embed.1} parent=1 // loop_header
      %s12 = sphi 0, %s16
      %p13 = scmp.ge.s32.totalorder %s12, 4
      %s19 = sphi 0, %s31
      %s20 = sphi 0, %s27
      %s21 = sphi 0, %s19
      %s22 = sphi 0, %s20
      %s23 = sphi 0, %s21
      %s24 = sphi 0, %s22
      %s34 = sphi 0, %s36
      %s37 = sphi 0, %s34
      %s38 = sphi 0, %s37
      %s54 = sphi 0, %s38
      %s60 = sphi 0, %s62
      %s63 = sphi 0, %s60
      %s64 = sphi 0, %s63
      %s80 = sphi 0, %s64
      %s86 = sphi 0, %s88
      %s89 = sphi 0, %s86
      %s90 = sphi 0, %s89
      %s106 = sphi 0, %s90
      %s114 = sphi 0, %s116
      %s117 = sphi 0, %s114
      %s118 = sphi 0, %s117
      %s134 = sphi 0, %s118
    $region4: #{hybrid_embed.1} parent=1 // loop_header_branch
      %15 = sbr.rel (%p13) target = $region8
    $region5: #{hybrid_embed.1} parent=1 // loop_body
      %s17 = ssub.s32 %s12, 1
      %s18 = ssub.s32 %s12, 2
      %s25 = sadd.s32 1, %s20
      %p26 = scmp.ge.s32.totalorder %s25, 1
      %s27 = scalar_select %p26, 0, %s25
      %s28 = sadd.s32 1, %s19
      %s29 = scalar_select %p26, %s28, %s19
      %p30 = scmp.ge.s32.totalorder %s29, 2
      %s31 = scalar_select %p30, 0, %s29
      %s32 = ssub.s32 %s19, %s31
      %p33 = scmp.eq.s32.totalorder %s32, 0
      %s35 = sadd.s32 %s34, 1
      %s36 = scalar_select %p33, %s34, %s35
      %p39 = pneg %p33
      %p40 = scmp.eq.s32.totalorder %s12, 1
      %p41 = por %p39, %p40
      %p42 = scmp.ne.s32.totalorder %s34, %s37
      %p43 = scmp.eq.s32.totalorder %s12, 0
      %p44 = por %p42, %p43
      %p45 = scmp.ne.s32.totalorder %s34, %s37
      %p46 = scmp.eq.s32.totalorder %s17, 1
      %p47 = por %p45, %p46
      %p48 = scmp.ne.s32.totalorder %s37, %s38
      %p49 = scmp.eq.s32.totalorder %s17, 0
      %p50 = por %p48, %p49
      %p51 = scmp.ne.s32.totalorder %s37, %s38
      %p52 = scmp.eq.s32.totalorder %s18, 1
      %p53 = por %p51, %p52
      %p55 = scmp.ne.s32.totalorder %s38, %s54
      %p56 = scmp.eq.s32.totalorder %s18, 0
      %p57 = por %p55, %p56
      %s58 = ssub.s32 %s20, %s27
      %p59 = scmp.eq.s32.totalorder %s58, 0
      %s61 = sadd.s32 %s60, 1
      %s62 = scalar_select %p59, %s60, %s61
      %p65 = pneg %p59
      %p66 = scmp.eq.s32.totalorder %s12, 1
      %p67 = por %p65, %p66
      %p68 = scmp.ne.s32.totalorder %s60, %s63
      %p69 = scmp.eq.s32.totalorder %s12, 0
      %p70 = por %p68, %p69
      %p71 = scmp.ne.s32.totalorder %s60, %s63
      %p72 = scmp.eq.s32.totalorder %s17, 1
      %p73 = por %p71, %p72
      %p74 = scmp.ne.s32.totalorder %s63, %s64
      %p75 = scmp.eq.s32.totalorder %s17, 0
      %p76 = por %p74, %p75
      %p77 = scmp.ne.s32.totalorder %s63, %s64
      %p78 = scmp.eq.s32.totalorder %s18, 1
      %p79 = por %p77, %p78
      %p81 = scmp.ne.s32.totalorder %s64, %s80
      %p82 = scmp.eq.s32.totalorder %s18, 0
      %p83 = por %p81, %p82
      %s84 = ssub.s32 %s20, %s27
      %p85 = scmp.eq.s32.totalorder %s84, 0
      %s87 = sadd.s32 %s86, 1
      %s88 = scalar_select %p85, %s86, %s87
      %p91 = pneg %p85
      %p92 = scmp.eq.s32.totalorder %s12, 1
      %p93 = por %p91, %p92
      %p94 = scmp.ne.s32.totalorder %s86, %s89
      %p95 = scmp.eq.s32.totalorder %s12, 0
      %p96 = por %p94, %p95
      %p97 = scmp.ne.s32.totalorder %s86, %s89
      %p98 = scmp.eq.s32.totalorder %s17, 1
      %p99 = por %p97, %p98
      %p100 = scmp.ne.s32.totalorder %s89, %s90
      %p101 = scmp.eq.s32.totalorder %s17, 0
      %p102 = por %p100, %p101
      %p103 = scmp.ne.s32.totalorder %s89, %s90
      %p104 = scmp.eq.s32.totalorder %s18, 1
      %p105 = por %p103, %p104
      %p107 = scmp.ne.s32.totalorder %s90, %s106
      %p108 = scmp.eq.s32.totalorder %s18, 0
      %p109 = por %p107, %p108
      %s110 = ssub.s32 %s19, %s31
      %s111 = ssub.s32 %s20, %s27
      %s112 = sor.u32 %s110, %s111
      %p113 = scmp.eq.s32.totalorder %s112, 0
      %s115 = sadd.s32 %s114, 1
      %s116 = scalar_select %p113, %s114, %s115
      %p119 = pneg %p113
      %p120 = scmp.eq.s32.totalorder %s12, 1
      %p121 = por %p119, %p120
      %p122 = scmp.ne.s32.totalorder %s114, %s117
      %p123 = scmp.eq.s32.totalorder %s12, 0
      %p124 = por %p122, %p123
      %p125 = scmp.ne.s32.totalorder %s114, %s117
      %p126 = scmp.eq.s32.totalorder %s17, 1
      %p127 = por %p125, %p126
      %p128 = scmp.ne.s32.totalorder %s117, %s118
      %p129 = scmp.eq.s32.totalorder %s17, 0
      %p130 = por %p128, %p129
      %p131 = scmp.ne.s32.totalorder %s117, %s118
      %p132 = scmp.eq.s32.totalorder %s18, 1
      %p133 = por %p131, %p132
      %p135 = scmp.ne.s32.totalorder %s118, %s134
      %p136 = scmp.eq.s32.totalorder %s18, 0
      %p137 = por %p135, %p136
      %p138 = scmp.le.s32.totalorder 1, %s12
      %p139 = scmp.lt.s32.totalorder %s12, 3
      %p140 = pnand %p138, %p139
      %p141 = pneg %p140
      // Predicated region
      $region9: #{hybrid_embed.1} parent=5 // pred_check
        _
      $region10: #{hybrid_embed.1} parent=5 // pred_check_branch
        %143 = sbr.rel (%p140) target = $region12
      $region11: #{hybrid_embed.1} parent=5 // pred_region
        %s144 = ssub.s32 %s12, 1
        // Predicated region
        $region13: #{hybrid_embed.1} parent=11 // pred_check
          %p145 = pneg %p76
        $region14: #{hybrid_embed.1} parent=11 // pred_check_branch
          %147 = sbr.rel (%p145) target = $region16
        $region15: #{hybrid_embed.1} parent=11 // pred_region
          %p148 = scmp.lt.s32.totalorder %s22, 0
          %s149 = scalar_select %p148, %s22, 0
          %s150 = smul.addr %s149, 4
          %s151 = scalar_lea.vmem %s1, %s150
        $region16: #{hybrid_embed.1} parent=11 // pred_fallthru
          _
        // Predicated region
        $region17: #{hybrid_embed.1} parent=11 // pred_check
          %p152 = pneg %p102
        $region18: #{hybrid_embed.1} parent=11 // pred_check_branch
          %154 = sbr.rel (%p152) target = $region20
        $region19: #{hybrid_embed.1} parent=11 // pred_region
          %p155 = scmp.lt.s32.totalorder %s22, 0
          %s156 = scalar_select %p155, %s22, 0
          %s157 = scalar_lea.vmem %s2, %s156
        $region20: #{hybrid_embed.1} parent=11 // pred_fallthru
          _
      $region12: #{hybrid_embed.1} parent=5 // pred_fallthru
        _
      %p158 = scmp.lt.s32.totalorder %s12, 2
      // Predicated region
      $region21: #{hybrid_embed.1} parent=5 // pred_check
        %p159 = pneg %p158
      $region22: #{hybrid_embed.1} parent=5 // pred_check_branch
        %161 = sbr.rel (%p159) target = $region24
      $region23: #{hybrid_embed.1} parent=5 // pred_region
        // Predicated region
        $region25: #{hybrid_embed.1} parent=23 // pred_check
          %p162 = pneg %p44
        $region26: #{hybrid_embed.1} parent=23 // pred_check_branch
          %164 = sbr.rel (%p162) target = $region28
        $region27: #{hybrid_embed.1} parent=23 // pred_region
          %s165 = smul.u32 2, %s19
          %p166 = scmp.lt.s32.totalorder %s165, 3
          %s167 = scalar_select %p166, %s165, 3
          %s168 = smul.addr %s167, 4
          %s169 = scalar_lea.vmem %s0, %s168
          %s170 = smul.u32 2, %s19
        $region28: #{hybrid_embed.1} parent=23 // pred_fallthru
          _
      $region24: #{hybrid_embed.1} parent=5 // pred_fallthru
        _
      %p171 = scmp.le.s32.totalorder 1, %s12
      %p172 = scmp.lt.s32.totalorder %s12, 3
      %p173 = pnand %p171, %p172
      %p174 = pneg %p173
      // Predicated region
      $region29: #{hybrid_embed.1} parent=5 // pred_check
        _
      $region30: #{hybrid_embed.1} parent=5 // pred_check_branch
        %176 = sbr.rel (%p173) target = $region32
      $region31: #{hybrid_embed.1} parent=5 // pred_region
        %s177 = ssub.s32 %s12, 1
        %s178 = smul.u32 2, %s21
        %p179 = scmp.lt.s32.totalorder %s178, 3
        %s180 = scalar_select %p179, %s178, 3
        %s181 = smul.addr %s180, 4
        %s182 = scalar_lea.vmem %s0, %s181
        %p183 = pneg %p50
        %p184 = pneg %p47
        %p185 = scmp.lt.s32.totalorder %s22, 0
        %s186 = scalar_select %p185, %s22, 0
        %s187 = smul.addr %s186, 4
        %s188 = scalar_lea.vmem %s1, %s187
        %p189 = pneg %p76
        %p190 = pneg %p73
        %p191 = scmp.lt.s32.totalorder %s22, 0
        %s192 = scalar_select %p191, %s22, 0
        %s193 = scalar_lea.vmem %s2, %s192
        %p194 = pneg %p102
        %p195 = pneg %p99
        %p196 = pneg %p130
        %p197 = pneg %p127
        %s198 = sand.u32 %s117, 1
        %s199 = scalar_lea.sflag [#allocation3], %s198
        %s200 = sand.u32 %s117, 1
        %s201 = smul.addr %s200, 16
        %s202 = scalar_lea.vmem [#allocation2], %s201
        %s203 = smul.u32 2, %s21
        %p204 = scmp.lt.s32.totalorder %s203, 3
        %s205 = scalar_select %p204, %s203, 3
        %s206 = smul.addr %s205, 4
        %s207 = scalar_lea.vmem %s0, %s206
        %s208 = smul.u32 2, %s21
        %p209 = scmp.lt.s32.totalorder %s22, 0
        %s210 = scalar_select %p209, %s22, 0
        %s211 = smul.addr %s210, 4
        %s212 = scalar_lea.vmem %s1, %s211
        %p213 = scmp.lt.s32.totalorder %s22, 0
        %s214 = scalar_select %p213, %s22, 0
        %s215 = scalar_lea.vmem %s2, %s214
        %s216 = smul.u32 2, %s21
        %v218 = vld [vmem:[%s207] sm:$0xf]
        %v219 = vld [vmem:[%s207 + $0x4] sm:$0xf]
        %v220 = vld [vmem:[%s212] sm:$0xf]
        %v221 = vld [vmem:[%s212 + $0x4] sm:$0xf]
        %v222 = vld [vmem:[%s212 + $0x8] sm:$0xf]
        %v223 = vld [vmem:[%s212 + $0xc] sm:$0xf]
        %v224 = vld [vmem:[%s212 + $0x10] sm:$0xf]
        %v225 = vld [vmem:[%s212 + $0x14] sm:$0xf]
        %v226 = vld [vmem:[%s212 + $0x18] sm:$0xf]
        %v227 = vld [vmem:[%s212 + $0x1c] sm:$0xf]
        %v228 = vld [vmem:[%s215] sm:$0x1]
        %v230 = vperm.slane %v228, 0
        %v234 = vunpack.c.l.b16 %v218
        %v235 = vunpack.c.l.b16 %v219
        %v236 = vpack.c.b16 %v235, %v234
        %v245 = vunpack.c.l.b16 %v220
        %v246 = vunpack.c.l.b16 %v221
        %v247 = vunpack.c.l.b16 %v222
        %v248 = vunpack.c.l.b16 %v223
        %v249 = vunpack.c.l.b16 %v224
        %v250 = vunpack.c.l.b16 %v225
        %v251 = vunpack.c.l.b16 %v226
        %v252 = vunpack.c.l.b16 %v227
        %v253 = vpack.c.b16 %v246, %v245
        %v254 = vpack.c.b16 %v248, %v247
        %v255 = vpack.c.b16 %v250, %v249
        %v256 = vpack.c.b16 %v252, %v251
        %vm261 = vcmask 523264
        %v263 = vsel %vm261, %v236, 0
        %265 = vmatpush.bf16.msra.mxu0 0
        %266 = vmatpush.bf16.msra.mxu0 0
        %267 = vmatpush.bf16.msra.mxu0 0
        %268 = vmatpush.bf16.msra.mxu0 0
        %269 = vmatpush.bf16.msra.mxu0 %v256
        %270 = vmatpush.bf16.msra.mxu0 %v255
        %271 = vmatpush.bf16.msra.mxu0 %v254
        %272 = vmatpush.bf16.msra.mxu0 %v253
        %273 = vmatmul.bf16.gmra.mxu0 %v263
        %v274 = vpop.f32.mrf.mxu0
        %v275 = vadd.f32 %v230, %v274
        %v276 = vpop.f32.mrf.mxu0
        %v277 = vadd.f32 %v230, %v276
        %278 = vdwg.mxu0
        %vm279 = vcmask 261120
        %280 = vst.msk [vmem:[%s202] sm:$0xff] %vm279, %v275
        %281 = vst.msk [vmem:[%s202 + $0x8] sm:$0xff] %vm279, %v277
        %s282 = sand.u32 %s117, 1
        %s283 = scalar_lea.sflag [#allocation3], %s282
        %s284 = sand.u32 %s117, 1
        %s285 = smul.addr %s284, 16
        %s286 = scalar_lea.vmem [#allocation2], %s285
        // Predicated region
        $region33: #{hybrid_embed.1} parent=31 // pred_check
          %p287 = pneg %p127
        $region34: #{hybrid_embed.1} parent=31 // pred_check_branch
          %289 = sbr.rel (%p287) target = $region36
        $region35: #{hybrid_embed.1} parent=31 // pred_region
          %s290 = smul.u32 2, %s21
          %292 = vsyncadd %s283, 0
          %s293 = sadd.s32 %s22, %s290
          %s294 = smul.addr %s293, 8
          %s295 = scalar_lea.hbm %s3, %s294
          %s296 = sshll.u32 %s286, 4
          %s297 = int_to_ptr.vmem [resolvable:$true] %s296
          %s298 = sshll.u32 %s295, 4
          %s299 = int_to_ptr.hbm [resolvable:$true] %s298
          %304 = dma.vmem_to_hbm [thread:$0]  %s297, 256, %s299, %s283, 128, 128, 8
        $region36: #{hybrid_embed.1} parent=31 // pred_fallthru
          _
      $region32: #{hybrid_embed.1} parent=5 // pred_fallthru
        _
      %p305 = scmp.le.s32.totalorder 2, %s12
      // Predicated region
      $region37: #{hybrid_embed.1} parent=5 // pred_check
        %p306 = pneg %p305
      $region38: #{hybrid_embed.1} parent=5 // pred_check_branch
        %308 = sbr.rel (%p306) target = $region40
      $region39: #{hybrid_embed.1} parent=5 // pred_region
        %s309 = ssub.s32 %s12, 2
        // Predicated region
        $region41: #{hybrid_embed.1} parent=39 // pred_check
          %p310 = pneg %p133
        $region42: #{hybrid_embed.1} parent=39 // pred_check_branch
          %312 = sbr.rel (%p310) target = $region44
        $region43: #{hybrid_embed.1} parent=39 // pred_region
          %s313 = sand.u32 %s118, 1
          %s314 = scalar_lea.sflag [#allocation3], %s313
          %s315 = sand.u32 %s118, 1
          %s316 = smul.addr %s315, 16
          %s317 = scalar_lea.vmem [#allocation2], %s316
          %319 = dma.done %s314, 256
        $region44: #{hybrid_embed.1} parent=39 // pred_fallthru
          _
      $region40: #{hybrid_embed.1} parent=5 // pred_fallthru
        _
    $region6: #{hybrid_embed.1} parent=1 // loop_footer
      %s16 = sadd.s32 1, %s12
    $region7: #{hybrid_embed.1} parent=1 // loop_footer_branch
      %11 = sbr.rel target = $region3
    $region8: #{hybrid_embed.1} parent=1 // loop_exit
      _
    %320 = vsyncpa [#allocation3], 1
    %s321 = scalar_lea.sflag [#allocation3], 1
    %322 = vsyncpa %s321, 1

</llo_original>
